<compile_context>
chip_gen: v7x
topology: tpu7x:2x2x1
jax: 0.10.0
libtpu: 0.0.40
codegen_flags: <defaults>
</compile_context>

<pallas_src>
import jax
import jax.numpy as jnp
from jax.experimental import pallas as pl
from jax.experimental.pallas import tpu as pltpu


def _round_up(x, m):
    return ((x + m - 1) // m) * m


def _vmem_limit(streamed_bytes):
    # explicit scoped-VMEM request with headroom; never below the 32 MiB
    # default, capped well under v7x's 64 MiB physical VMEM.
    return int(min(max(2 * streamed_bytes + (4 << 20), 32 << 20), 56 << 20))


_BUFFERED = getattr(pl, "Buffered", None)


def _const_spec(shape):
    """Whole-array, constant-index operand; single pipeline buffer if supported."""
    imap = lambda i: tuple(0 for _ in shape)
    if _BUFFERED is not None:
        try:
            return pl.BlockSpec(shape, imap, pipeline_mode=_BUFFERED(1))
        except TypeError:
            pass
    return pl.BlockSpec(shape, imap)


# --------------------- kernel 1: V-tiled encoder / projection ----------------

def _lsdf_encode_kernel(
    xyz_ref,       # [tv, ndim]   vertex tile (streamed)
    phi_pinv_ref,  # [K, tv]      matching column tile (streamed, dominant)
    y_pinv_ref,    # [M, K]
    y_tmpl_ref,    # [Kt, M]
    enc_w_ref,     # [ndim, F]
    enc_b_ref,     # [1, F]
    dec_wa_ref,    # [F, Cpad]    decoder weight rows acting on T_features
    s_ref,         # out [Kt, Cpad]
    a_acc,         # VMEM scratch [K, ndim]   phi_pinv @ xyz accumulator
    r_acc,         # VMEM scratch [K, 1]      phi_pinv row-sum accumulator
):
    v = pl.program_id(0)

    @pl.when(v == 0)
    def _():
        a_acc[...] = jnp.zeros_like(a_acc)
        r_acc[...] = jnp.zeros_like(r_acc)

    phi = phi_pinv_ref[...]
    # deep-contraction accumulation on the MXU (the only per-tile matmul)
    a_acc[...] += jnp.dot(phi, xyz_ref[...], preferred_element_type=jnp.float32)
    # row-sum on the XLU (separate slot -> essentially free next to the dot)
    r_acc[...] += jnp.sum(phi, axis=1, keepdims=True)

    @pl.when(v == pl.num_programs(0) - 1)
    def _():
        # encoder fold:  phi_pinv @ (xyz @ W + b) == A @ W + r (x) b
        kf = (jnp.dot(a_acc[...], enc_w_ref[...],
                      preferred_element_type=jnp.float32)
              + r_acc[...] * enc_b_ref[...])                      # [K, F]
        emb = jnp.dot(y_pinv_ref[...], kf,
                      preferred_element_type=jnp.float32)         # [M, F]
        t_spec = jnp.dot(y_tmpl_ref[...], emb,
                         preferred_element_type=jnp.float32)      # [Kt, F]
        # pre-multiply the decoder weights so the Vt-scaled tail kernel only
        # needs one [Vt,Kt]@[Kt,Cpad] matmul (no [Vt,F] intermediate)
        s_ref[...] = jnp.dot(t_spec, dec_wa_ref[...],
                             preferred_element_type=jnp.float32
                             ).astype(s_ref.dtype)                # [Kt, Cpad]


# --------------------- kernel 2: Vt-tiled template tail ----------------------

def _lsdf_template_kernel(
    s_ref,          # [Kt, Cpad]   tiny, constant
    dec_wb_ref,     # [Ft, Cpad]   decoder weight rows acting on template feats
    dec_b_ref,      # [1, Cpad]
    phi_tmpl_ref,   # [tvt, Kt]    streamed
    feat_tmpl_ref,  # [tvt, Ft]    streamed
    out_ref,        # [tvt, Cpad]
):
    out = jnp.dot(phi_tmpl_ref[...], s_ref[...],
                  preferred_element_type=jnp.float32)
    out = out + jnp.dot(feat_tmpl_ref[...], dec_wb_ref[...],
                        preferred_element_type=jnp.float32)
    out_ref[...] = (out + dec_b_ref[...]).astype(out_ref.dtype)


# ------------------------------- wrapper --------------------------------------

def lsdf_forward_fused(xyz, phi_pinv, y_pinv, y_tmpl, phi_tmpl, feat_tmpl,
                       enc_w, enc_b, dec_wa, dec_wb, dec_b, *,
                       ndim_out, tv=16384, tvt=4096):
    """Entire LS_DF_net forward (linear stand-in diffnets); returns [Vt, ndim_out]."""
    V, ndim = xyz.shape
    K = phi_pinv.shape[0]
    M = y_pinv.shape[0]
    Kt = y_tmpl.shape[0]
    Vt, Ft = feat_tmpl.shape
    F = enc_w.shape[1]
    Cpad = dec_wa.shape[1]
    out_dtype = xyz.dtype

    # ---- stage 1: V tiling (multiple of 128 lanes); zero-pad instead of the
    #      old whole-V fallback so pipelining survives any V.
    tv = max(128, _round_up(min(int(tv), _round_up(V, 128)), 128))
    Vp = _round_up(V, tv)
    if Vp != V:
        xyz = jnp.pad(xyz, ((0, Vp - V), (0, 0)))
        phi_pinv = jnp.pad(phi_pinv, ((0, 0), (0, Vp - V)))
    nv = Vp // tv

    est1 = (2 * (K * tv + tv * ndim)
            + (M * K + Kt * M + ndim * F + F + F * Cpad + Kt * Cpad)) * 4
    s = pl.pallas_call(
        _lsdf_encode_kernel,
        out_shape=jax.ShapeDtypeStruct((Kt, Cpad), jnp.float32),
        grid=(nv,),
        in_specs=[
            pl.BlockSpec((tv, ndim), lambda i: (i, 0)),   # xyz row tile
            pl.BlockSpec((K, tv), lambda i: (0, i)),      # phi_pinv column tile
            _const_spec((M, K)),
            _const_spec((Kt, M)),
            _const_spec((ndim, F)),
            _const_spec((1, F)),
            _const_spec((F, Cpad)),
        ],
        out_specs=pl.BlockSpec((Kt, Cpad), lambda i: (0, 0)),
        scratch_shapes=[pltpu.VMEM((K, ndim), jnp.float32),
                        pltpu.VMEM((K, 1), jnp.float32)],
        compiler_params=pltpu.CompilerParams(
            dimension_semantics=("arbitrary",),          # V is the reduction axis
            vmem_limit_bytes=_vmem_limit(est1)),
    )(xyz, phi_pinv, y_pinv, y_tmpl, enc_w, enc_b, dec_wa)

    # ---- stage 2: Vt tiling (multiple of 8 sublanes); zero-pad Vt if needed.
    tvt = max(8, _round_up(min(int(tvt), _round_up(Vt, 8)), 8))
    Vtp = _round_up(Vt, tvt)
    if Vtp != Vt:
        phi_tmpl = jnp.pad(phi_tmpl, ((0, Vtp - Vt), (0, 0)))
        feat_tmpl = jnp.pad(feat_tmpl, ((0, Vtp - Vt), (0, 0)))
    nvt = Vtp // tvt

    est2 = (2 * tvt * (Kt + Ft + Cpad) + (Kt + Ft + 1) * Cpad) * 4
    out_padded = pl.pallas_call(
        _lsdf_template_kernel,
        out_shape=jax.ShapeDtypeStruct((Vtp, Cpad), out_dtype),
        grid=(nvt,),
        in_specs=[
            _const_spec((Kt, Cpad)),
            _const_spec((Ft, Cpad)),
            _const_spec((1, Cpad)),
            pl.BlockSpec((tvt, Kt), lambda i: (i, 0)),    # phi_tmpl row tile
            pl.BlockSpec((tvt, Ft), lambda i: (i, 0)),    # feat_tmpl row tile
        ],
        out_specs=pl.BlockSpec((tvt, Cpad), lambda i: (i, 0)),
        compiler_params=pltpu.CompilerParams(
            dimension_semantics=("parallel",),           # shards across TCs (v7x)
            vmem_limit_bytes=_vmem_limit(est2)),
    )(s, dec_wb, dec_b, phi_tmpl, feat_tmpl)

    # only 8 channels of padding to slice off (not 128)
    return out_padded[:Vt, :ndim_out]


# ------------------------------- LS_DF_net ------------------------------------

class LSDFNetPallas:
    """JAX/Pallas re-implementation of LS_DF_net.forward."""

    SUBLANE = 8  # decoder output channels padded to one sublane group

    def __init__(self, key, ndim=3, nfeature=32, template_features_dim=4):
        self.ndim = ndim
        self.nfeature = nfeature
        self.tfd = template_features_dim
        k1, k2, k3, k4 = jax.random.split(key, 4)
        # encoder diffnet stand-in: C_in=ndim -> C_out=nfeature
        self.enc_w = 0.1 * jax.random.normal(k1, (ndim, nfeature), jnp.float32)
        self.enc_b = 0.1 * jax.random.normal(k2, (1, nfeature), jnp.float32)
        # decoder diffnet stand-in: C_in=nfeature+tfd -> C_out=ndim
        self.dec_w = 0.1 * jax.random.normal(
            k3, (nfeature + template_features_dim, ndim), jnp.float32)
        self.dec_b = 0.1 * jax.random.normal(k4, (1, ndim), jnp.float32)

        # sublane-padded decoder params, built ONCE outside the hot path.
        cpad = max(self.SUBLANE, _round_up(ndim, self.SUBLANE))
        dec_w_p = jnp.zeros((nfeature + template_features_dim, cpad),
                            jnp.float32).at[:, :ndim].set(self.dec_w)
        self.dec_b_p = jnp.zeros((1, cpad), jnp.float32).at[:, :ndim].set(self.dec_b)
        self.dec_wa = dec_w_p[:nfeature, :]    # rows multiplying T_features
        self.dec_wb = dec_w_p[nfeature:, :]    # rows multiplying template feats

    def forward(self, batch, *, tv=16384, tvt=4096):
        s, t = batch["shape"], batch["template"]
        return lsdf_forward_fused(
            s["xyz"], s["phi_pinv"], s["Y_pinv"],
            t["Y"], t["phi"], t["meshfeatures"],
            self.enc_w, self.enc_b, self.dec_wa, self.dec_wb, self.dec_b_p,
            ndim_out=self.ndim, tv=tv, tvt=tvt)

    # pure-JAX reference for correctness checking
    def forward_ref(self, batch):
        s, t = batch["shape"], batch["template"]
        features = s["xyz"] @ self.enc_w + self.enc_b
        emb = s["Y_pinv"] @ (s["phi_pinv"] @ features)
        T_features = t["phi"] @ (t["Y"] @ emb)
        T_features = jnp.concatenate([T_features, t["meshfeatures"]], axis=-1)
        return T_features @ self.dec_w + self.dec_b


# --------------------------------- main ----------------------------------------

if __name__ == "__main__":
    key = jax.random.PRNGKey(0)
    kp, kd = jax.random.split(key)

    # small synthetic shapes (V, Vt multiples of 128 so both axes are tiled)
    V, K, M = 256, 16, 8        # shape mesh verts, spectral dim, limit-shape dim
    Vt, Kt = 256, 16            # template mesh verts, template spectral dim
    ndim, nfeature, tfd = 3, 32, 4

    ks = jax.random.split(kd, 6)
    batch = {
        "shape": {
            "xyz":      jax.random.normal(ks[0], (V, ndim), jnp.float32),
            "phi_pinv": jax.random.normal(ks[1], (K, V), jnp.float32) * 0.3,
            "Y_pinv":   jax.random.normal(ks[2], (M, K), jnp.float32) * 0.3,
        },
        "template": {
            "Y":            jax.random.normal(ks[3], (Kt, M), jnp.float32) * 0.3,
            "phi":          jax.random.normal(ks[4], (Vt, Kt), jnp.float32) * 0.3,
            "meshfeatures": jax.random.normal(ks[5], (Vt, tfd), jnp.float32),
        },
    }

    model = LSDFNetPallas(kp, ndim=ndim, nfeature=nfeature,
                          template_features_dim=tfd)

    # tv=128 -> 2 accumulation steps over V; tvt=128 -> 2 parallel tail steps.
    out = model.forward(batch, tv=128, tvt=128)
    out = jax.block_until_ready(out)

    ref = model.forward_ref(batch)
    assert out.shape == (Vt, ndim), out.shape
    assert jnp.allclose(out, ref, atol=1e-3, rtol=1e-3), "mismatch vs reference"

    print("KERNEL_OK")
</pallas_src>

<mosaic_0001>
module attributes {stable_mosaic.version = 11 : i64} {
  func.func @_lsdf_encode_kernel(%arg0: i32, %arg1: memref<128x3xf32, #tpu.memory_space<vmem>>, %arg2: memref<16x128xf32, #tpu.memory_space<vmem>>, %arg3: memref<8x16xf32, #tpu.memory_space<vmem>>, %arg4: memref<16x8xf32, #tpu.memory_space<vmem>>, %arg5: memref<3x32xf32, #tpu.memory_space<vmem>>, %arg6: memref<1x32xf32, #tpu.memory_space<vmem>>, %arg7: memref<32x8xf32, #tpu.memory_space<vmem>>, %arg8: memref<16x8xf32, #tpu.memory_space<vmem>>, %arg9: memref<16x3xf32, #tpu.memory_space<vmem>>, %arg10: memref<16x1xf32, #tpu.memory_space<vmem>>) attributes {dimension_semantics = [#tpu.dimension_semantics<arbitrary>], iteration_bounds = array<i64: 2>, scalar_prefetch = 0 : i64, scratch_operands = 2 : i64, tpu.core_type = #tpu.core_type<tc>, window_params = [{transform_indices = @transform_0, window_bounds = array<i64: 128, 3>}, {transform_indices = @transform_1, window_bounds = array<i64: 16, 128>}, {pipeline_mode = #tpu.pipeline_mode<synchronous>, transform_indices = @transform_2, window_bounds = array<i64: 8, 16>}, {pipeline_mode = #tpu.pipeline_mode<synchronous>, transform_indices = @transform_3, window_bounds = array<i64: 16, 8>}, {pipeline_mode = #tpu.pipeline_mode<synchronous>, transform_indices = @transform_4, window_bounds = array<i64: 3, 32>}, {pipeline_mode = #tpu.pipeline_mode<synchronous>, transform_indices = @transform_5, window_bounds = array<i64: 1, 32>}, {pipeline_mode = #tpu.pipeline_mode<synchronous>, transform_indices = @transform_6, window_bounds = array<i64: 32, 8>}, {pipeline_mode = #tpu.pipeline_mode<synchronous>, transform_indices = @transform_7, window_bounds = array<i64: 16, 8>}]} {
    %c0_i32 = arith.constant 0 : i32
    %0 = arith.cmpi eq, %arg0, %c0_i32 : i32
    %1 = arith.extui %0 : i1 to i32
    %c0_i32_0 = arith.constant 0 : i32
    %2 = arith.cmpi ne, %1, %c0_i32_0 : i32
    scf.if %2 {
      %cst_14 = arith.constant 0.000000e+00 : f32
      %17 = vector.broadcast %cst_14 : f32 to vector<16x3xf32>
      %c0_15 = arith.constant 0 : index
      %c0_16 = arith.constant 0 : index
      %18 = vector.load %arg9[%c0_15, %c0_16] : memref<16x3xf32, #tpu.memory_space<vmem>>, vector<16x3xf32>
      tpu.vector_store %arg9[%c0_15, %c0_16], %17 {strides = array<i32>} : memref<16x3xf32, #tpu.memory_space<vmem>>, vector<16x3xf32>,
      %cst_17 = arith.constant 0.000000e+00 : f32
      %19 = vector.broadcast %cst_17 : f32 to vector<16x1xf32>
      %c0_18 = arith.constant 0 : index
      %c0_19 = arith.constant 0 : index
      %20 = vector.load %arg10[%c0_18, %c0_19] : memref<16x1xf32, #tpu.memory_space<vmem>>, vector<16x1xf32>
      tpu.vector_store %arg10[%c0_18, %c0_19], %19 {strides = array<i32>} : memref<16x1xf32, #tpu.memory_space<vmem>>, vector<16x1xf32>,
    } else {
    }
    %c0 = arith.constant 0 : index
    %c0_1 = arith.constant 0 : index
    %3 = vector.load %arg2[%c0, %c0_1] : memref<16x128xf32, #tpu.memory_space<vmem>>, vector<16x128xf32>
    %c0_2 = arith.constant 0 : index
    %c0_3 = arith.constant 0 : index
    %4 = vector.load %arg9[%c0_2, %c0_3] : memref<16x3xf32, #tpu.memory_space<vmem>>, vector<16x3xf32>
    %c0_4 = arith.constant 0 : index
    %c0_5 = arith.constant 0 : index
    %5 = vector.load %arg1[%c0_4, %c0_5] : memref<128x3xf32, #tpu.memory_space<vmem>>, vector<128x3xf32>
    %cst = arith.constant dense<0.000000e+00> : vector<16x3xf32>
    %6 = tpu.matmul %3, %5, %cst {dimension_numbers = #tpu.dot_dimension_numbers<[1], [0], [0], [1], [0, 0, 1, 1], [], []>} : vector<16x128xf32>, vector<128x3xf32>, vector<16x3xf32> -> vector<16x3xf32>
    %7 = arith.addf %4, %6 : vector<16x3xf32>
    %c0_6 = arith.constant 0 : index
    %c0_7 = arith.constant 0 : index
    %8 = vector.load %arg9[%c0_6, %c0_7] : memref<16x3xf32, #tpu.memory_space<vmem>>, vector<16x3xf32>
    tpu.vector_store %arg9[%c0_6, %c0_7], %7 {strides = array<i32>} : memref<16x3xf32, #tpu.memory_space<vmem>>, vector<16x3xf32>,
    %c0_8 = arith.constant 0 : index
    %c0_9 = arith.constant 0 : index
    %9 = vector.load %arg10[%c0_8, %c0_9] : memref<16x1xf32, #tpu.memory_space<vmem>>, vector<16x1xf32>
    %cst_10 = arith.constant dense<0.000000e+00> : vector<16xf32>
    %10 = vector.multi_reduction <add>, %3, %cst_10 [1] : vector<16x128xf32> to vector<16xf32>
    %11 = vector.shape_cast %10 : vector<16xf32> to vector<16x1xf32>
    %12 = arith.addf %9, %11 : vector<16x1xf32>
    %c0_11 = arith.constant 0 : index
    %c0_12 = arith.constant 0 : index
    %13 = vector.load %arg10[%c0_11, %c0_12] : memref<16x1xf32, #tpu.memory_space<vmem>>, vector<16x1xf32>
    tpu.vector_store %arg10[%c0_11, %c0_12], %12 {strides = array<i32>} : memref<16x1xf32, #tpu.memory_space<vmem>>, vector<16x1xf32>,
    %c1_i32 = arith.constant 1 : i32
    %14 = arith.cmpi eq, %arg0, %c1_i32 : i32
    %15 = arith.extui %14 : i1 to i32
    %c0_i32_13 = arith.constant 0 : i32
    %16 = arith.cmpi ne, %15, %c0_i32_13 : i32
    scf.if %16 {
      %c0_14 = arith.constant 0 : index
      %c0_15 = arith.constant 0 : index
      %17 = vector.load %arg9[%c0_14, %c0_15] : memref<16x3xf32, #tpu.memory_space<vmem>>, vector<16x3xf32>
      %c0_16 = arith.constant 0 : index
      %c0_17 = arith.constant 0 : index
      %18 = vector.load %arg5[%c0_16, %c0_17] : memref<3x32xf32, #tpu.memory_space<vmem>>, vector<3x32xf32>
      %cst_18 = arith.constant dense<0.000000e+00> : vector<16x32xf32>
      %19 = tpu.matmul %17, %18, %cst_18 {dimension_numbers = #tpu.dot_dimension_numbers<[1], [0], [0], [1], [0, 0, 1, 1], [], []>} : vector<16x3xf32>, vector<3x32xf32>, vector<16x32xf32> -> vector<16x32xf32>
      %c0_19 = arith.constant 0 : index
      %c0_20 = arith.constant 0 : index
      %20 = vector.load %arg10[%c0_19, %c0_20] : memref<16x1xf32, #tpu.memory_space<vmem>>, vector<16x1xf32>
      %c0_21 = arith.constant 0 : index
      %c0_22 = arith.constant 0 : index
      %21 = vector.load %arg6[%c0_21, %c0_22] : memref<1x32xf32, #tpu.memory_space<vmem>>, vector<1x32xf32>
      %22 = vector.broadcast %20 : vector<16x1xf32> to vector<16x32xf32>
      %23 = vector.broadcast %21 : vector<1x32xf32> to vector<16x32xf32>
      %24 = arith.mulf %22, %23 : vector<16x32xf32>
      %25 = arith.addf %19, %24 : vector<16x32xf32>
      %c0_23 = arith.constant 0 : index
      %c0_24 = arith.constant 0 : index
      %26 = vector.load %arg3[%c0_23, %c0_24] : memref<8x16xf32, #tpu.memory_space<vmem>>, vector<8x16xf32>
      %cst_25 = arith.constant dense<0.000000e+00> : vector<8x32xf32>
      %27 = tpu.matmul %26, %25, %cst_25 {dimension_numbers = #tpu.dot_dimension_numbers<[1], [0], [0], [1], [0, 0, 1, 1], [], []>} : vector<8x16xf32>, vector<16x32xf32>, vector<8x32xf32> -> vector<8x32xf32>
      %c0_26 = arith.constant 0 : index
      %c0_27 = arith.constant 0 : index
      %28 = vector.load %arg4[%c0_26, %c0_27] : memref<16x8xf32, #tpu.memory_space<vmem>>, vector<16x8xf32>
      %cst_28 = arith.constant dense<0.000000e+00> : vector<16x32xf32>
      %29 = tpu.matmul %28, %27, %cst_28 {dimension_numbers = #tpu.dot_dimension_numbers<[1], [0], [0], [1], [0, 0, 1, 1], [], []>} : vector<16x8xf32>, vector<8x32xf32>, vector<16x32xf32> -> vector<16x32xf32>
      %c0_29 = arith.constant 0 : index
      %c0_30 = arith.constant 0 : index
      %30 = vector.load %arg7[%c0_29, %c0_30] : memref<32x8xf32, #tpu.memory_space<vmem>>, vector<32x8xf32>
      %cst_31 = arith.constant dense<0.000000e+00> : vector<16x8xf32>
      %31 = tpu.matmul %29, %30, %cst_31 {dimension_numbers = #tpu.dot_dimension_numbers<[1], [0], [0], [1], [0, 0, 1, 1], [], []>} : vector<16x32xf32>, vector<32x8xf32>, vector<16x8xf32> -> vector<16x8xf32>
      %c0_32 = arith.constant 0 : index
      %c0_33 = arith.constant 0 : index
      %32 = vector.load %arg8[%c0_32, %c0_33] : memref<16x8xf32, #tpu.memory_space<vmem>>, vector<16x8xf32>
      tpu.vector_store %arg8[%c0_32, %c0_33], %31 {strides = array<i32>} : memref<16x8xf32, #tpu.memory_space<vmem>>, vector<16x8xf32>,
    } else {
    }
    return
  }
  func.func @transform_0(%arg0: i32) -> (i32, i32) {
    %c0_i32 = arith.constant 0 : i32
    %c0_i32_0 = arith.constant 0 : i32
    return %arg0, %c0_i32 : i32, i32
  }
  func.func @transform_1(%arg0: i32) -> (i32, i32) {
    %c0_i32 = arith.constant 0 : i32
    %c0_i32_0 = arith.constant 0 : i32
    return %c0_i32, %arg0 : i32, i32
  }
  func.func @transform_2(%arg0: i32) -> (i32, i32) {
    %c0_i32 = arith.constant 0 : i32
    %c0_i32_0 = arith.constant 0 : i32
    %c0_i32_1 = arith.constant 0 : i32
    return %c0_i32, %c0_i32_0 : i32, i32
  }
  func.func @transform_3(%arg0: i32) -> (i32, i32) {
    %c0_i32 = arith.constant 0 : i32
    %c0_i32_0 = arith.constant 0 : i32
    %c0_i32_1 = arith.constant 0 : i32
    return %c0_i32, %c0_i32_0 : i32, i32
  }
  func.func @transform_4(%arg0: i32) -> (i32, i32) {
    %c0_i32 = arith.constant 0 : i32
    %c0_i32_0 = arith.constant 0 : i32
    %c0_i32_1 = arith.constant 0 : i32
    return %c0_i32, %c0_i32_0 : i32, i32
  }
  func.func @transform_5(%arg0: i32) -> (i32, i32) {
    %c0_i32 = arith.constant 0 : i32
    %c0_i32_0 = arith.constant 0 : i32
    %c0_i32_1 = arith.constant 0 : i32
    return %c0_i32, %c0_i32_0 : i32, i32
  }
  func.func @transform_6(%arg0: i32) -> (i32, i32) {
    %c0_i32 = arith.constant 0 : i32
    %c0_i32_0 = arith.constant 0 : i32
    %c0_i32_1 = arith.constant 0 : i32
    return %c0_i32, %c0_i32_0 : i32, i32
  }
  func.func @transform_7(%arg0: i32) -> (i32, i32) {
    %c0_i32 = arith.constant 0 : i32
    %c0_i32_0 = arith.constant 0 : i32
    %c0_i32_1 = arith.constant 0 : i32
    return %c0_i32, %c0_i32_0 : i32, i32
  }
}

</mosaic_0001>

<llo_original>
// kernel: tpu_custom_call.1
$region0: #{tpu_custom_call.1}
  #allocation0 [shape = 'u32[]', space=smem, size = 0x4, offset = 0x4, fixed_abs, tag = 'smem constant byte address 0x4 - core index']
  #allocation1 [shape = 'u32[144,128]{1,0:T(1,128)}', space=vmem, size = 0x12000, scoped, tag = 'internal scratch']
  #allocation2 [shape = 'f32[16,3]{1,0:T(8,128)}', space=vmem, size = 0x2000, scoped, tag = 'scratch operand']
  #allocation3 [shape = 'f32[16,1]{1,0:T(8,128)}', space=vmem, size = 0x2000, scoped, tag = 'scratch operand']
  %s0 = inlined_call_operand.vmem [shape: f32[256,3], index: 0, kind: input, shape index: {}]
  %s1 = inlined_call_operand.vmem [shape: f32[16,256], index: 1, kind: input, shape index: {}]
  %s2 = inlined_call_operand.vmem [shape: f32[8,16], index: 2, kind: input, shape index: {}]
  %s3 = inlined_call_operand.vmem [shape: f32[16,8], index: 3, kind: input, shape index: {}]
  %s4 = inlined_call_operand.vmem [shape: f32[3,32], index: 4, kind: input, shape index: {}]
  %s5 = inlined_call_operand.vmem [shape: f32[1,32], index: 5, kind: input, shape index: {}]
  %s6 = inlined_call_operand.vmem [shape: f32[32,8], index: 6, kind: input, shape index: {}]
  %s7 = inlined_call_operand.vmem [shape: f32[16,8], index: 7, kind: output, shape index: {}]
  %s8 = sld [smem:[#allocation0]]
  $region107: #{tpu_custom_call.1} parent=0
    _
  %s10 = ssub.s32 1, %s8
  %s11 = scalar_select 0, %s10, %s8
  $region1: #{tpu_custom_call.1} parent=0
    #allocation4 [shape = 'u8[16384]{0}', space=vmem, size = 0x4000, scoped, tag = 'input window, operand 1']
    loop: start=0, step=1, limit=4
    $region2: #{tpu_custom_call.1} parent=1 // loop_pre_header
      _
    $region3: #{tpu_custom_call.1} parent=1 // loop_header
      %s13 = sphi 0, %s17
      %p14 = scmp.ge.s32.totalorder %s13, 4
      %s23 = sphi 0, %s25
      %s26 = sphi 0, %s23
      %s27 = sphi 0, %s26
      %s43 = sphi 0, %s27
      %s49 = sphi 0, %s51
      %s52 = sphi 0, %s49
      %s53 = sphi 0, %s52
      %s69 = sphi 0, %s53
      %s73 = sphi 0, %s73
      %s75 = sphi 0, %s73
      %s76 = sphi 0, %s75
      %s90 = sphi 0, %s76
      %s94 = sphi 0, %s94
      %s96 = sphi 0, %s94
      %s97 = sphi 0, %s96
      %s111 = sphi 0, %s97
      %s115 = sphi 0, %s115
      %s117 = sphi 0, %s115
      %s118 = sphi 0, %s117
      %s132 = sphi 0, %s118
      %s136 = sphi 0, %s136
      %s138 = sphi 0, %s136
      %s139 = sphi 0, %s138
      %s153 = sphi 0, %s139
      %s157 = sphi 0, %s157
      %s159 = sphi 0, %s157
      %s160 = sphi 0, %s159
      %s174 = sphi 0, %s160
      %s178 = sphi 0, %s178
      %s180 = sphi 0, %s178
      %s181 = sphi 0, %s180
      %s195 = sphi 0, %s181
    $region4: #{tpu_custom_call.1} parent=1 // loop_header_branch
      %16 = sbr.rel (%p14) target = $region8
    $region5: #{tpu_custom_call.1} parent=1 // loop_body
      %s18 = ssub.s32 %s13, 1
      %s19 = ssub.s32 %s13, 2
      %s20 = sadd.s32 %s13, 1
      %s21 = ssub.s32 %s13, %s20
      %p22 = scmp.eq.s32.totalorder %s21, 0
      %s24 = sadd.s32 %s23, 1
      %s25 = scalar_select %p22, %s23, %s24
      %p28 = pneg %p22
      %p29 = scmp.eq.s32.totalorder %s13, 1
      %p30 = por %p28, %p29
      %p31 = scmp.ne.s32.totalorder %s23, %s26
      %p32 = scmp.eq.s32.totalorder %s13, 0
      %p33 = por %p31, %p32
      %p34 = scmp.ne.s32.totalorder %s23, %s26
      %p35 = scmp.eq.s32.totalorder %s18, 1
      %p36 = por %p34, %p35
      %p37 = scmp.ne.s32.totalorder %s26, %s27
      %p38 = scmp.eq.s32.totalorder %s18, 0
      %p39 = por %p37, %p38
      %p40 = scmp.ne.s32.totalorder %s26, %s27
      %p41 = scmp.eq.s32.totalorder %s19, 1
      %p42 = por %p40, %p41
      %p44 = scmp.ne.s32.totalorder %s27, %s43
      %p45 = scmp.eq.s32.totalorder %s19, 0
      %p46 = por %p44, %p45
      %s47 = ssub.s32 %s13, %s20
      %p48 = scmp.eq.s32.totalorder %s47, 0
      %s50 = sadd.s32 %s49, 1
      %s51 = scalar_select %p48, %s49, %s50
      %p54 = pneg %p48
      %p55 = scmp.eq.s32.totalorder %s13, 1
      %p56 = por %p54, %p55
      %p57 = scmp.ne.s32.totalorder %s49, %s52
      %p58 = scmp.eq.s32.totalorder %s13, 0
      %p59 = por %p57, %p58
      %p60 = scmp.ne.s32.totalorder %s49, %s52
      %p61 = scmp.eq.s32.totalorder %s18, 1
      %p62 = por %p60, %p61
      %p63 = scmp.ne.s32.totalorder %s52, %s53
      %p64 = scmp.eq.s32.totalorder %s18, 0
      %p65 = por %p63, %p64
      %p66 = scmp.ne.s32.totalorder %s52, %s53
      %p67 = scmp.eq.s32.totalorder %s19, 1
      %p68 = por %p66, %p67
      %p70 = scmp.ne.s32.totalorder %s53, %s69
      %p71 = scmp.eq.s32.totalorder %s19, 0
      %p72 = por %p70, %p71
      %s74 = sadd.s32 %s73, 1
      %p77 = scmp.eq.s32.totalorder %s13, 1
      %p78 = scmp.ne.s32.totalorder %s73, %s75
      %p79 = scmp.eq.s32.totalorder %s13, 0
      %p80 = por %p78, %p79
      %p81 = scmp.ne.s32.totalorder %s73, %s75
      %p82 = scmp.eq.s32.totalorder %s18, 1
      %p83 = por %p81, %p82
      %p84 = scmp.ne.s32.totalorder %s75, %s76
      %p85 = scmp.eq.s32.totalorder %s18, 0
      %p86 = por %p84, %p85
      %p87 = scmp.ne.s32.totalorder %s75, %s76
      %p88 = scmp.eq.s32.totalorder %s19, 1
      %p89 = por %p87, %p88
      %p91 = scmp.ne.s32.totalorder %s76, %s90
      %p92 = scmp.eq.s32.totalorder %s19, 0
      %p93 = por %p91, %p92
      %s95 = sadd.s32 %s94, 1
      %p98 = scmp.eq.s32.totalorder %s13, 1
      %p99 = scmp.ne.s32.totalorder %s94, %s96
      %p100 = scmp.eq.s32.totalorder %s13, 0
      %p101 = por %p99, %p100
      %p102 = scmp.ne.s32.totalorder %s94, %s96
      %p103 = scmp.eq.s32.totalorder %s18, 1
      %p104 = por %p102, %p103
      %p105 = scmp.ne.s32.totalorder %s96, %s97
      %p106 = scmp.eq.s32.totalorder %s18, 0
      %p107 = por %p105, %p106
      %p108 = scmp.ne.s32.totalorder %s96, %s97
      %p109 = scmp.eq.s32.totalorder %s19, 1
      %p110 = por %p108, %p109
      %p112 = scmp.ne.s32.totalorder %s97, %s111
      %p113 = scmp.eq.s32.totalorder %s19, 0
      %p114 = por %p112, %p113
      %s116 = sadd.s32 %s115, 1
      %p119 = scmp.eq.s32.totalorder %s13, 1
      %p120 = scmp.ne.s32.totalorder %s115, %s117
      %p121 = scmp.eq.s32.totalorder %s13, 0
      %p122 = por %p120, %p121
      %p123 = scmp.ne.s32.totalorder %s115, %s117
      %p124 = scmp.eq.s32.totalorder %s18, 1
      %p125 = por %p123, %p124
      %p126 = scmp.ne.s32.totalorder %s117, %s118
      %p127 = scmp.eq.s32.totalorder %s18, 0
      %p128 = por %p126, %p127
      %p129 = scmp.ne.s32.totalorder %s117, %s118
      %p130 = scmp.eq.s32.totalorder %s19, 1
      %p131 = por %p129, %p130
      %p133 = scmp.ne.s32.totalorder %s118, %s132
      %p134 = scmp.eq.s32.totalorder %s19, 0
      %p135 = por %p133, %p134
      %s137 = sadd.s32 %s136, 1
      %p140 = scmp.eq.s32.totalorder %s13, 1
      %p141 = scmp.ne.s32.totalorder %s136, %s138
      %p142 = scmp.eq.s32.totalorder %s13, 0
      %p143 = por %p141, %p142
      %p144 = scmp.ne.s32.totalorder %s136, %s138
      %p145 = scmp.eq.s32.totalorder %s18, 1
      %p146 = por %p144, %p145
      %p147 = scmp.ne.s32.totalorder %s138, %s139
      %p148 = scmp.eq.s32.totalorder %s18, 0
      %p149 = por %p147, %p148
      %p150 = scmp.ne.s32.totalorder %s138, %s139
      %p151 = scmp.eq.s32.totalorder %s19, 1
      %p152 = por %p150, %p151
      %p154 = scmp.ne.s32.totalorder %s139, %s153
      %p155 = scmp.eq.s32.totalorder %s19, 0
      %p156 = por %p154, %p155
      %s158 = sadd.s32 %s157, 1
      %p161 = scmp.eq.s32.totalorder %s13, 1
      %p162 = scmp.ne.s32.totalorder %s157, %s159
      %p163 = scmp.eq.s32.totalorder %s13, 0
      %p164 = por %p162, %p163
      %p165 = scmp.ne.s32.totalorder %s157, %s159
      %p166 = scmp.eq.s32.totalorder %s18, 1
      %p167 = por %p165, %p166
      %p168 = scmp.ne.s32.totalorder %s159, %s160
      %p169 = scmp.eq.s32.totalorder %s18, 0
      %p170 = por %p168, %p169
      %p171 = scmp.ne.s32.totalorder %s159, %s160
      %p172 = scmp.eq.s32.totalorder %s19, 1
      %p173 = por %p171, %p172
      %p175 = scmp.ne.s32.totalorder %s160, %s174
      %p176 = scmp.eq.s32.totalorder %s19, 0
      %p177 = por %p175, %p176
      %s179 = sadd.s32 %s178, 1
      %p182 = scmp.eq.s32.totalorder %s13, 1
      %p183 = scmp.ne.s32.totalorder %s178, %s180
      %p184 = scmp.eq.s32.totalorder %s13, 0
      %p185 = por %p183, %p184
      %p186 = scmp.ne.s32.totalorder %s178, %s180
      %p187 = scmp.eq.s32.totalorder %s18, 1
      %p188 = por %p186, %p187
      %p189 = scmp.ne.s32.totalorder %s180, %s181
      %p190 = scmp.eq.s32.totalorder %s18, 0
      %p191 = por %p189, %p190
      %p192 = scmp.ne.s32.totalorder %s180, %s181
      %p193 = scmp.eq.s32.totalorder %s19, 1
      %p194 = por %p192, %p193
      %p196 = scmp.ne.s32.totalorder %s181, %s195
      %p197 = scmp.eq.s32.totalorder %s19, 0
      %p198 = por %p196, %p197
      %p199 = scmp.le.s32.totalorder 1, %s13
      %p200 = scmp.lt.s32.totalorder %s13, 3
      %p201 = pnand %p199, %p200
      %p202 = pneg %p201
      // Predicated region
      $region9: #{tpu_custom_call.1} parent=5 // pred_check
        _
      $region10: #{tpu_custom_call.1} parent=5 // pred_check_branch
        %204 = sbr.rel (%p201) target = $region12
      $region11: #{tpu_custom_call.1} parent=5 // pred_region
        %s205 = ssub.s32 %s13, 1
        // Predicated region
        $region13: #{tpu_custom_call.1} parent=11 // pred_check
          %p206 = pneg %p86
        $region14: #{tpu_custom_call.1} parent=11 // pred_check_branch
          %208 = sbr.rel (%p206) target = $region16
        $region15: #{tpu_custom_call.1} parent=11 // pred_region
          _
        $region16: #{tpu_custom_call.1} parent=11 // pred_fallthru
          _
        // Predicated region
        $region17: #{tpu_custom_call.1} parent=11 // pred_check
          %p209 = pneg %p107
        $region18: #{tpu_custom_call.1} parent=11 // pred_check_branch
          %211 = sbr.rel (%p209) target = $region20
        $region19: #{tpu_custom_call.1} parent=11 // pred_region
          _
        $region20: #{tpu_custom_call.1} parent=11 // pred_fallthru
          _
        // Predicated region
        $region21: #{tpu_custom_call.1} parent=11 // pred_check
          %p212 = pneg %p128
        $region22: #{tpu_custom_call.1} parent=11 // pred_check_branch
          %214 = sbr.rel (%p212) target = $region24
        $region23: #{tpu_custom_call.1} parent=11 // pred_region
          _
        $region24: #{tpu_custom_call.1} parent=11 // pred_fallthru
          _
        // Predicated region
        $region25: #{tpu_custom_call.1} parent=11 // pred_check
          %p215 = pneg %p149
        $region26: #{tpu_custom_call.1} parent=11 // pred_check_branch
          %217 = sbr.rel (%p215) target = $region28
        $region27: #{tpu_custom_call.1} parent=11 // pred_region
          _
        $region28: #{tpu_custom_call.1} parent=11 // pred_fallthru
          _
        // Predicated region
        $region29: #{tpu_custom_call.1} parent=11 // pred_check
          %p218 = pneg %p170
        $region30: #{tpu_custom_call.1} parent=11 // pred_check_branch
          %220 = sbr.rel (%p218) target = $region32
        $region31: #{tpu_custom_call.1} parent=11 // pred_region
          _
        $region32: #{tpu_custom_call.1} parent=11 // pred_fallthru
          _
      $region12: #{tpu_custom_call.1} parent=5 // pred_fallthru
        _
      %p221 = scmp.lt.s32.totalorder %s13, 2
      // Predicated region
      $region33: #{tpu_custom_call.1} parent=5 // pred_check
        %p222 = pneg %p221
      $region34: #{tpu_custom_call.1} parent=5 // pred_check_branch
        %224 = sbr.rel (%p222) target = $region36
      $region35: #{tpu_custom_call.1} parent=5 // pred_region
        // Predicated region
        $region37: #{tpu_custom_call.1} parent=35 // pred_check
          %p225 = pneg %p33
        $region38: #{tpu_custom_call.1} parent=35 // pred_check_branch
          %227 = sbr.rel (%p225) target = $region40
        $region39: #{tpu_custom_call.1} parent=35 // pred_region
          %s228 = smul.u32 16, %s13
          %p229 = scmp.lt.s32.totalorder %s228, 31
          %s230 = scalar_select %p229, %s228, 31
          %s231 = smul.addr %s230, 8
          %s232 = scalar_lea.vmem %s0, %s231
          %s233 = smul.u32 16, %s13
        $region40: #{tpu_custom_call.1} parent=35 // pred_fallthru
          _
        // Predicated region
        $region41: #{tpu_custom_call.1} parent=35 // pred_check
          %p234 = pneg %p59
        $region42: #{tpu_custom_call.1} parent=35 // pred_check_branch
          %236 = sbr.rel (%p234) target = $region44
        $region43: #{tpu_custom_call.1} parent=35 // pred_region
          %s237 = sand.u32 %s49, 1
          %s238 = sand.u32 %s49, 1
          %s239 = smul.addr %s238, 16
          %s240 = scalar_lea.vmem [#allocation4], %s239
          %s241 = smul.addr %s13, 8
          %s242 = scalar_lea.vmem %s1, %s241
          // Predicated region
          $region45: #{tpu_custom_call.1} parent=43 // pred_check
            _
          $region46: #{tpu_custom_call.1} parent=43 // pred_check_branch
            %244 = sbr.rel (0) target = $region48
          $region47: #{tpu_custom_call.1} parent=43 // pred_region
            // Predicated region
            $region49: #{tpu_custom_call.1} parent=47 // pred_check
              _
            $region50: #{tpu_custom_call.1} parent=47 // pred_check_branch
              %246 = sbr.rel (0) target = $region52
            $region51: #{tpu_custom_call.1} parent=47 // pred_region
              // Predicated region
              $region64: #{tpu_custom_call.1} parent=51 // pred_check
                _
              $region65: #{tpu_custom_call.1} parent=51 // pred_check_branch
                %263 = sbr.rel (0) target = $region67
              $region66: #{tpu_custom_call.1} parent=51 // pred_region
                loop: start=0, step=1, limit=1
                $region68: #{tpu_custom_call.1} parent=66 // loop_pre_header
                  _
                $region69: #{tpu_custom_call.1} parent=66 // loop_header
                  %s265 = sphi 0, %s269
                  %p266 = scmp.ge.s32.totalorder %s265, 1
                  %s270 = sphi %s242, %s242
                  %s271 = sphi %s240, %s240
                $region70: #{tpu_custom_call.1} parent=66 // loop_header_branch
                  %268 = sbr.rel (%p266) target = $region74
                $region71: #{tpu_custom_call.1} parent=66 // loop_body
                  %v272 = vld [vmem:[%s270] sm:$0xff]
                  %273 = vst [vmem:[%s271] sm:$0xff] %v272
                  %v274 = vld [vmem:[%s270 + $0x10] sm:$0xff]
                  %275 = vst [vmem:[%s271 + $0x8] sm:$0xff] %v274
                $region72: #{tpu_custom_call.1} parent=66 // loop_footer
                  %s269 = sadd.s32 1, %s265
                $region73: #{tpu_custom_call.1} parent=66 // loop_footer_branch
                  %264 = sbr.rel target = $region69
                $region74: #{tpu_custom_call.1} parent=66 // loop_exit
                  _
              $region67: #{tpu_custom_call.1} parent=51 // pred_fallthru
                _
              // Predicated region
              $region75: #{tpu_custom_call.1} parent=51 // pred_check
                _
              $region76: #{tpu_custom_call.1} parent=51 // pred_check_branch
                %277 = sbr.rel target = $region78
              $region77: #{tpu_custom_call.1} parent=51 // pred_region
                _
              $region78: #{tpu_custom_call.1} parent=51 // pred_fallthru
                _
            $region52: #{tpu_custom_call.1} parent=47 // pred_fallthru
              _
            // Predicated region
            $region53: #{tpu_custom_call.1} parent=47 // pred_check
              _
            $region54: #{tpu_custom_call.1} parent=47 // pred_check_branch
              %248 = sbr.rel target = $region56
            $region55: #{tpu_custom_call.1} parent=47 // pred_region
              loop: start=0, step=1, limit=1
              $region57: #{tpu_custom_call.1} parent=55 // loop_pre_header
                _
              $region58: #{tpu_custom_call.1} parent=55 // loop_header
                %s251 = sphi 0, %s255
                %p252 = scmp.ge.s32.totalorder %s251, 1
                %s256 = sphi %s242, %s242
                %s257 = sphi %s240, %s240
              $region59: #{tpu_custom_call.1} parent=55 // loop_header_branch
                %254 = sbr.rel (%p252) target = $region63
              $region60: #{tpu_custom_call.1} parent=55 // loop_body
                %v258 = vld [vmem:[%s256] sm:$0xff]
                %259 = vst [vmem:[%s257] sm:$0xff] %v258
                %v260 = vld [vmem:[%s256 + $0x10] sm:$0xff]
                %261 = vst [vmem:[%s257 + $0x8] sm:$0xff] %v260
              $region61: #{tpu_custom_call.1} parent=55 // loop_footer
                %s255 = sadd.s32 1, %s251
              $region62: #{tpu_custom_call.1} parent=55 // loop_footer_branch
                %250 = sbr.rel target = $region58
              $region63: #{tpu_custom_call.1} parent=55 // loop_exit
                _
            $region56: #{tpu_custom_call.1} parent=47 // pred_fallthru
              _
          $region48: #{tpu_custom_call.1} parent=43 // pred_fallthru
            _
          %278 = vnop
        $region44: #{tpu_custom_call.1} parent=35 // pred_fallthru
          _
      $region36: #{tpu_custom_call.1} parent=5 // pred_fallthru
        _
      %p279 = scmp.le.s32.totalorder 1, %s13
      %p280 = scmp.lt.s32.totalorder %s13, 3
      %p281 = pnand %p279, %p280
      %p282 = pneg %p281
      // Predicated region
      $region79: #{tpu_custom_call.1} parent=5 // pred_check
        _
      $region80: #{tpu_custom_call.1} parent=5 // pred_check_branch
        %284 = sbr.rel (%p281) target = $region82
      $region81: #{tpu_custom_call.1} parent=5 // pred_region
        %s285 = ssub.s32 %s13, 1
        %s286 = sand.u32 %s52, 1
        %s287 = sand.u32 %s52, 1
        %s288 = smul.addr %s287, 16
        %s289 = scalar_lea.vmem [#allocation4], %s288
        // Predicated region
        $region83: #{tpu_custom_call.1} parent=81 // pred_check
          %p290 = pneg %p65
        $region84: #{tpu_custom_call.1} parent=81 // pred_check_branch
          %292 = sbr.rel (%p290) target = $region86
        $region85: #{tpu_custom_call.1} parent=81 // pred_region
          _
        $region86: #{tpu_custom_call.1} parent=81 // pred_fallthru
          _
        %s293 = smul.u32 16, %s18
        %p294 = scmp.lt.s32.totalorder %s293, 31
        %s295 = scalar_select %p294, %s293, 31
        %s296 = smul.addr %s295, 8
        %s297 = scalar_lea.vmem %s0, %s296
        %p298 = pneg %p39
        %p299 = pneg %p36
        %s300 = sand.u32 %s52, 1
        %s301 = sand.u32 %s52, 1
        %s302 = smul.addr %s301, 16
        %s303 = scalar_lea.vmem [#allocation4], %s302
        %p304 = pneg %p65
        %p305 = pneg %p62
        %p306 = pneg %p86
        %p307 = pneg %p83
        %p308 = pneg %p107
        %p309 = pneg %p104
        %p310 = pneg %p128
        %p311 = pneg %p125
        %p312 = pneg %p149
        %p313 = pneg %p146
        %p314 = pneg %p170
        %p315 = pneg %p167
        %p316 = pneg %p191
        %p317 = pneg %p188
        %s318 = smul.u32 16, %s18
        %p319 = scmp.lt.s32.totalorder %s318, 31
        %s320 = scalar_select %p319, %s318, 31
        %s321 = smul.addr %s320, 8
        %s322 = scalar_lea.vmem %s0, %s321
        %s323 = smul.u32 16, %s18
        %p324 = scmp.eq.s32.totalorder %s18, 0
        // Predicated region
        $region87: #{tpu_custom_call.1} parent=81 // pred_check
          %p325 = pneg %p324
        $region88: #{tpu_custom_call.1} parent=81 // pred_check_branch
          %327 = sbr.rel (%p325) target = $region90
        $region89: #{tpu_custom_call.1} parent=81 // pred_region
          %vm328 = vcmask 23552
          %329 = vst.msk [vmem:[#allocation2] sm:$0xff] %vm328, 0.0
          %330 = vst.msk [vmem:[#allocation2 + $0x8] sm:$0xff] %vm328, 0.0
          %vm331 = vcmask 7168
          %332 = vst.msk [vmem:[#allocation3] sm:$0xff] %vm331, 0.0
          %333 = vst.msk [vmem:[#allocation3 + $0x8] sm:$0xff] %vm331, 0.0
        $region90: #{tpu_custom_call.1} parent=81 // pred_fallthru
          _
        %v334 = vld [vmem:[%s289] sm:$0xff]
        %v335 = vld [vmem:[%s289 + $0x8] sm:$0xff]
        %v336 = vld [vmem:[#allocation2] sm:$0xff]
        %v337 = vld [vmem:[#allocation2 + $0x8] sm:$0xff]
        %v338 = vld [vmem:[%s322] sm:$0xff]
        %v339 = vld [vmem:[%s322 + $0x8] sm:$0xff]
        %v340 = vld [vmem:[%s322 + $0x10] sm:$0xff]
        %v341 = vld [vmem:[%s322 + $0x18] sm:$0xff]
        %v342 = vld [vmem:[%s322 + $0x20] sm:$0xff]
        %v343 = vld [vmem:[%s322 + $0x28] sm:$0xff]
        %v344 = vld [vmem:[%s322 + $0x30] sm:$0xff]
        %v345 = vld [vmem:[%s322 + $0x38] sm:$0xff]
        %v346 = vld [vmem:[%s322 + $0x40] sm:$0xff]
        %v347 = vld [vmem:[%s322 + $0x48] sm:$0xff]
        %v348 = vld [vmem:[%s322 + $0x50] sm:$0xff]
        %v349 = vld [vmem:[%s322 + $0x58] sm:$0xff]
        %v350 = vld [vmem:[%s322 + $0x60] sm:$0xff]
        %v351 = vld [vmem:[%s322 + $0x68] sm:$0xff]
        %v352 = vld [vmem:[%s322 + $0x70] sm:$0xff]
        %v353 = vld [vmem:[%s322 + $0x78] sm:$0xff]
        %354 = vmatprep.subr.mxu0 0.0
        %355 = vmatpush1.msra.mxu0 %v338
        %356 = vmatprep.subr.mxu0 0.0
        %357 = vmatpush1.msra.mxu0 %v339
        %358 = vmatprep.subr.mxu0 0.0
        %359 = vmatpush1.msra.mxu0 %v340
        %360 = vmatprep.subr.mxu0 0.0
        %361 = vmatpush1.msra.mxu0 %v341
        %362 = vmatprep.subr.mxu0 0.0
        %363 = vmatpush1.msra.mxu0 %v342
        %364 = vmatprep.subr.mxu0 0.0
        %365 = vmatpush1.msra.mxu0 %v343
        %366 = vmatprep.subr.mxu0 0.0
        %367 = vmatpush1.msra.mxu0 %v344
        %368 = vmatprep.subr.mxu0 0.0
        %369 = vmatpush1.msra.mxu0 %v345
        %370 = vmatprep.subr.mxu0 0.0
        %371 = vmatpush1.msra.mxu0 %v346
        %372 = vmatprep.subr.mxu0 0.0
        %373 = vmatpush1.msra.mxu0 %v347
        %374 = vmatprep.subr.mxu0 0.0
        %375 = vmatpush1.msra.mxu0 %v348
        %376 = vmatprep.subr.mxu0 0.0
        %377 = vmatpush1.msra.mxu0 %v349
        %378 = vmatprep.subr.mxu0 0.0
        %379 = vmatpush1.msra.mxu0 %v350
        %380 = vmatprep.subr.mxu0 0.0
        %381 = vmatpush1.msra.mxu0 %v351
        %382 = vmatprep.subr.mxu0 0.0
        %383 = vmatpush1.msra.mxu0 %v352
        %384 = vmatprep.subr.mxu0 0.0
        %385 = vmatpush1.msra.mxu0 %v353
        %386 = vmatprep.subr.mxu0 0.0
        %387 = vmatpush1.msra.mxu0 0.0
        %388 = vmatprep.subr.mxu0 0.0
        %389 = vmatpush1.msra.mxu0 0.0
        %390 = vmatprep.subr.mxu0 0.0
        %391 = vmatpush1.msra.mxu0 0.0
        %392 = vmatprep.subr.mxu0 0.0
        %393 = vmatpush1.msra.mxu0 0.0
        %394 = vmatprep.subr.mxu0 0.0
        %395 = vmatpush1.msra.mxu0 0.0
        %396 = vmatprep.subr.mxu0 0.0
        %397 = vmatpush1.msra.mxu0 0.0
        %398 = vmatprep.subr.mxu0 0.0
        %399 = vmatpush1.msra.mxu0 0.0
        %400 = vmatprep.subr.mxu0 0.0
        %401 = vmatpush1.msra.mxu0 0.0
        %402 = vmatprep.subr.mxu0 0.0
        %403 = vmatpush1.msra.mxu0 0.0
        %404 = vmatprep.subr.mxu0 0.0
        %405 = vmatpush1.msra.mxu0 0.0
        %406 = vmatprep.subr.mxu0 0.0
        %407 = vmatpush1.msra.mxu0 0.0
        %408 = vmatprep.subr.mxu0 0.0
        %409 = vmatpush1.msra.mxu0 0.0
        %410 = vmatprep.subr.mxu0 0.0
        %411 = vmatpush1.msra.mxu0 0.0
        %412 = vmatprep.subr.mxu0 0.0
        %413 = vmatpush1.msra.mxu0 0.0
        %414 = vmatprep.subr.mxu0 0.0
        %415 = vmatpush1.msra.mxu0 0.0
        %416 = vmatprep.subr.mxu0 0.0
        %417 = vmatpush1.msra.mxu0 0.0
        %418 = vmatprep.mubr.f32.mxu0 0.0
        %419 = vmatmul.mubr.f32.gmra.mrb[0].mxu0 %v334
        %v420 = vpop.f32.mrb[0].mxu0
        %v421 = vadd.f32 0.0, %v420
        %v422 = vpop.f32.mrb[0].mxu0
        %423 = vmatprep.mubr.f32.mxu0 0.0
        %424 = vmatmul.mubr.f32.gmra.mrb[0].mxu0 %v335
        %v425 = vpop.f32.mrb[0].mxu0
        %v426 = vadd.f32 0.0, %v425
        %v427 = vpop.f32.mrb[0].mxu0
        %428 = vdwg.mxu0
        %v429 = vadd.f32 %v336, %v421
        %v430 = vadd.f32 %v337, %v426
        %vm431 = vcmask 23552
        %432 = vst.msk [vmem:[#allocation2] sm:$0xff] %vm431, %v429
        %433 = vst.msk [vmem:[#allocation2 + $0x8] sm:$0xff] %vm431, %v430
        %v434 = vld [vmem:[#allocation3] sm:$0xff]
        %v435 = vld [vmem:[#allocation3 + $0x8] sm:$0xff]
        %436 = vadd.xlane.f32.xlu0 %v334
        %v437 = vpop.xlane.xlu0 %436
        %438 = vadd.xlane.f32.xlu0 %v335
        %v439 = vpop.xlane.xlu0 %438
        %v440 = vadd.f32 %v434, %v437
        %v441 = vadd.f32 %v435, %v439
        %vm442 = vcmask 7168
        %443 = vst.msk [vmem:[#allocation3] sm:$0xff] %vm442, %v440
        %444 = vst.msk [vmem:[#allocation3 + $0x8] sm:$0xff] %vm442, %v441
        %p445 = scmp.eq.s32.totalorder %s18, 1
        // Predicated region
        $region91: #{tpu_custom_call.1} parent=81 // pred_check
          %p446 = pneg %p445
        $region92: #{tpu_custom_call.1} parent=81 // pred_check_branch
          %448 = sbr.rel (%p446) target = $region94
        $region93: #{tpu_custom_call.1} parent=81 // pred_region
          %v449 = vld [vmem:[#allocation2] sm:$0xff]
          %v450 = vld [vmem:[#allocation2 + $0x8] sm:$0xff]
          %v451 = vld [vmem:[%s4] sm:$0x7]
          %v452 = vld [vmem:[#allocation3] sm:$0xff]
          %v453 = vld [vmem:[#allocation3 + $0x8] sm:$0xff]
          %v454 = vld [vmem:[%s5] sm:$0x1]
          %456 = vset.pattern.permute.xlu0 0
          %457 = vperm.xlu0 %456, %v452
          %v458 = vpop.permute.xlu0 %457
          %461 = vset.pattern.permute.xlu0 0
          %462 = vperm.xlu0 %461, %v453
          %v463 = vpop.permute.xlu0 %462
          %v466 = vlaneseq
          %v467 = vshrl.u32 %v466, 7
          %v468 = vsub.s32 0, %v467
          %v469 = vrot.slane %v454, %v468
          %v471 = vmul.f32 %v458, %v469
          %v472 = vmul.f32 %v463, %v469
          %v474 = vsel %vm431, %v449, 0
          %v477 = vsel %vm431, %v450, 0
          %vm479 = vcmask 1042432
          %v481 = vsel %vm479, %v451, 0
          %483 = vmatprep.subr.mxu0 0.0
          %484 = vmatpush1.msra.mxu0 %v481
          %485 = vmatprep.subr.mxu0 0.0
          %486 = vmatpush1.msra.mxu0 0.0
          %487 = vmatprep.subr.mxu0 0.0
          %488 = vmatpush1.msra.mxu0 0.0
          %489 = vmatprep.subr.mxu0 0.0
          %490 = vmatpush1.msra.mxu0 0.0
          %491 = vmatprep.subr.mxu0 0.0
          %492 = vmatpush1.msra.mxu0 0.0
          %493 = vmatprep.subr.mxu0 0.0
          %494 = vmatpush1.msra.mxu0 0.0
          %495 = vmatprep.subr.mxu0 0.0
          %496 = vmatpush1.msra.mxu0 0.0
          %497 = vmatprep.subr.mxu0 0.0
          %498 = vmatpush1.msra.mxu0 0.0
          %499 = vmatprep.subr.mxu0 0.0
          %500 = vmatpush1.msra.mxu0 0.0
          %501 = vmatprep.subr.mxu0 0.0
          %502 = vmatpush1.msra.mxu0 0.0
          %503 = vmatprep.subr.mxu0 0.0
          %504 = vmatpush1.msra.mxu0 0.0
          %505 = vmatprep.subr.mxu0 0.0
          %506 = vmatpush1.msra.mxu0 0.0
          %507 = vmatprep.subr.mxu0 0.0
          %508 = vmatpush1.msra.mxu0 0.0
          %509 = vmatprep.subr.mxu0 0.0
          %510 = vmatpush1.msra.mxu0 0.0
          %511 = vmatprep.subr.mxu0 0.0
          %512 = vmatpush1.msra.mxu0 0.0
          %513 = vmatprep.subr.mxu0 0.0
          %514 = vmatpush1.msra.mxu0 0.0
          %515 = vmatprep.subr.mxu0 0.0
          %516 = vmatpush1.msra.mxu0 0.0
          %517 = vmatprep.subr.mxu0 0.0
          %518 = vmatpush1.msra.mxu0 0.0
          %519 = vmatprep.subr.mxu0 0.0
          %520 = vmatpush1.msra.mxu0 0.0
          %521 = vmatprep.subr.mxu0 0.0
          %522 = vmatpush1.msra.mxu0 0.0
          %523 = vmatprep.subr.mxu0 0.0
          %524 = vmatpush1.msra.mxu0 0.0
          %525 = vmatprep.subr.mxu0 0.0
          %526 = vmatpush1.msra.mxu0 0.0
          %527 = vmatprep.subr.mxu0 0.0
          %528 = vmatpush1.msra.mxu0 0.0
          %529 = vmatprep.subr.mxu0 0.0
          %530 = vmatpush1.msra.mxu0 0.0
          %531 = vmatprep.subr.mxu0 0.0
          %532 = vmatpush1.msra.mxu0 0.0
          %533 = vmatprep.subr.mxu0 0.0
          %534 = vmatpush1.msra.mxu0 0.0
          %535 = vmatprep.subr.mxu0 0.0
          %536 = vmatpush1.msra.mxu0 0.0
          %537 = vmatprep.subr.mxu0 0.0
          %538 = vmatpush1.msra.mxu0 0.0
          %539 = vmatprep.subr.mxu0 0.0
          %540 = vmatpush1.msra.mxu0 0.0
          %541 = vmatprep.subr.mxu0 0.0
          %542 = vmatpush1.msra.mxu0 0.0
          %543 = vmatprep.subr.mxu0 0.0
          %544 = vmatpush1.msra.mxu0 0.0
          %545 = vmatprep.subr.mxu0 0.0
          %546 = vmatpush1.msra.mxu0 0.0
          %547 = vmatprep.mubr.f32.mxu0 0.0
          %548 = vmatmul.mubr.f32.gmra.mrb[0].mxu0 %v474
          %v549 = vpop.f32.mrb[0].mxu0
          %v550 = vadd.f32 %v471, %v549
          %v551 = vpop.f32.mrb[0].mxu0
          %552 = vmatprep.mubr.f32.mxu0 0.0
          %553 = vmatmul.mubr.f32.gmra.mrb[0].mxu0 %v477
          %v554 = vpop.f32.mrb[0].mxu0
          %v555 = vadd.f32 %v472, %v554
          %v556 = vpop.f32.mrb[0].mxu0
          %557 = vdwg.mxu0
          %v558 = vld [vmem:[%s2] sm:$0xff]
          %vm559 = vcmask 130048
          %v561 = vsel %vm559, %v558, 0
          %563 = vmatprep.subr.mxu0 0.0
          %564 = vmatpush1.msra.mxu0 %v550
          %565 = vmatprep.subr.mxu0 0.0
          %566 = vmatpush1.msra.mxu0 %v555
          %567 = vmatprep.subr.mxu0 0.0
          %568 = vmatpush1.msra.mxu0 0.0
          %569 = vmatprep.subr.mxu0 0.0
          %570 = vmatpush1.msra.mxu0 0.0
          %571 = vmatprep.subr.mxu0 0.0
          %572 = vmatpush1.msra.mxu0 0.0
          %573 = vmatprep.subr.mxu0 0.0
          %574 = vmatpush1.msra.mxu0 0.0
          %575 = vmatprep.subr.mxu0 0.0
          %576 = vmatpush1.msra.mxu0 0.0
          %577 = vmatprep.subr.mxu0 0.0
          %578 = vmatpush1.msra.mxu0 0.0
          %579 = vmatprep.subr.mxu0 0.0
          %580 = vmatpush1.msra.mxu0 0.0
          %581 = vmatprep.subr.mxu0 0.0
          %582 = vmatpush1.msra.mxu0 0.0
          %583 = vmatprep.subr.mxu0 0.0
          %584 = vmatpush1.msra.mxu0 0.0
          %585 = vmatprep.subr.mxu0 0.0
          %586 = vmatpush1.msra.mxu0 0.0
          %587 = vmatprep.subr.mxu0 0.0
          %588 = vmatpush1.msra.mxu0 0.0
          %589 = vmatprep.subr.mxu0 0.0
          %590 = vmatpush1.msra.mxu0 0.0
          %591 = vmatprep.subr.mxu0 0.0
          %592 = vmatpush1.msra.mxu0 0.0
          %593 = vmatprep.subr.mxu0 0.0
          %594 = vmatpush1.msra.mxu0 0.0
          %595 = vmatprep.subr.mxu0 0.0
          %596 = vmatpush1.msra.mxu0 0.0
          %597 = vmatprep.subr.mxu0 0.0
          %598 = vmatpush1.msra.mxu0 0.0
          %599 = vmatprep.subr.mxu0 0.0
          %600 = vmatpush1.msra.mxu0 0.0
          %601 = vmatprep.subr.mxu0 0.0
          %602 = vmatpush1.msra.mxu0 0.0
          %603 = vmatprep.subr.mxu0 0.0
          %604 = vmatpush1.msra.mxu0 0.0
          %605 = vmatprep.subr.mxu0 0.0
          %606 = vmatpush1.msra.mxu0 0.0
          %607 = vmatprep.subr.mxu0 0.0
          %608 = vmatpush1.msra.mxu0 0.0
          %609 = vmatprep.subr.mxu0 0.0
          %610 = vmatpush1.msra.mxu0 0.0
          %611 = vmatprep.subr.mxu0 0.0
          %612 = vmatpush1.msra.mxu0 0.0
          %613 = vmatprep.subr.mxu0 0.0
          %614 = vmatpush1.msra.mxu0 0.0
          %615 = vmatprep.subr.mxu0 0.0
          %616 = vmatpush1.msra.mxu0 0.0
          %617 = vmatprep.subr.mxu0 0.0
          %618 = vmatpush1.msra.mxu0 0.0
          %619 = vmatprep.subr.mxu0 0.0
          %620 = vmatpush1.msra.mxu0 0.0
          %621 = vmatprep.subr.mxu0 0.0
          %622 = vmatpush1.msra.mxu0 0.0
          %623 = vmatprep.subr.mxu0 0.0
          %624 = vmatpush1.msra.mxu0 0.0
          %625 = vmatprep.subr.mxu0 0.0
          %626 = vmatpush1.msra.mxu0 0.0
          %627 = vmatprep.mubr.f32.mxu0 0.0
          %628 = vmatmul.mubr.f32.gmra.mrb[0].mxu0 %v561
          %v629 = vpop.f32.mrb[0].mxu0
          %v630 = vadd.f32 0.0, %v629
          %v631 = vpop.f32.mrb[0].mxu0
          %632 = vdwg.mxu0
          %v633 = vld [vmem:[%s3] sm:$0xff]
          %v634 = vld [vmem:[%s3 + $0x8] sm:$0xff]
          %vm635 = vcmask 64512
          %v637 = vsel %vm635, %v633, 0
          %v640 = vsel %vm635, %v634, 0
          %642 = vmatprep.subr.mxu0 0.0
          %643 = vmatpush1.msra.mxu0 %v630
          %644 = vmatprep.subr.mxu0 0.0
          %645 = vmatpush1.msra.mxu0 0.0
          %646 = vmatprep.subr.mxu0 0.0
          %647 = vmatpush1.msra.mxu0 0.0
          %648 = vmatprep.subr.mxu0 0.0
          %649 = vmatpush1.msra.mxu0 0.0
          %650 = vmatprep.subr.mxu0 0.0
          %651 = vmatpush1.msra.mxu0 0.0
          %652 = vmatprep.subr.mxu0 0.0
          %653 = vmatpush1.msra.mxu0 0.0
          %654 = vmatprep.subr.mxu0 0.0
          %655 = vmatpush1.msra.mxu0 0.0
          %656 = vmatprep.subr.mxu0 0.0
          %657 = vmatpush1.msra.mxu0 0.0
          %658 = vmatprep.subr.mxu0 0.0
          %659 = vmatpush1.msra.mxu0 0.0
          %660 = vmatprep.subr.mxu0 0.0
          %661 = vmatpush1.msra.mxu0 0.0
          %662 = vmatprep.subr.mxu0 0.0
          %663 = vmatpush1.msra.mxu0 0.0
          %664 = vmatprep.subr.mxu0 0.0
          %665 = vmatpush1.msra.mxu0 0.0
          %666 = vmatprep.subr.mxu0 0.0
          %667 = vmatpush1.msra.mxu0 0.0
          %668 = vmatprep.subr.mxu0 0.0
          %669 = vmatpush1.msra.mxu0 0.0
          %670 = vmatprep.subr.mxu0 0.0
          %671 = vmatpush1.msra.mxu0 0.0
          %672 = vmatprep.subr.mxu0 0.0
          %673 = vmatpush1.msra.mxu0 0.0
          %674 = vmatprep.subr.mxu0 0.0
          %675 = vmatpush1.msra.mxu0 0.0
          %676 = vmatprep.subr.mxu0 0.0
          %677 = vmatpush1.msra.mxu0 0.0
          %678 = vmatprep.subr.mxu0 0.0
          %679 = vmatpush1.msra.mxu0 0.0
          %680 = vmatprep.subr.mxu0 0.0
          %681 = vmatpush1.msra.mxu0 0.0
          %682 = vmatprep.subr.mxu0 0.0
          %683 = vmatpush1.msra.mxu0 0.0
          %684 = vmatprep.subr.mxu0 0.0
          %685 = vmatpush1.msra.mxu0 0.0
          %686 = vmatprep.subr.mxu0 0.0
          %687 = vmatpush1.msra.mxu0 0.0
          %688 = vmatprep.subr.mxu0 0.0
          %689 = vmatpush1.msra.mxu0 0.0
          %690 = vmatprep.subr.mxu0 0.0
          %691 = vmatpush1.msra.mxu0 0.0
          %692 = vmatprep.subr.mxu0 0.0
          %693 = vmatpush1.msra.mxu0 0.0
          %694 = vmatprep.subr.mxu0 0.0
          %695 = vmatpush1.msra.mxu0 0.0
          %696 = vmatprep.subr.mxu0 0.0
          %697 = vmatpush1.msra.mxu0 0.0
          %698 = vmatprep.subr.mxu0 0.0
          %699 = vmatpush1.msra.mxu0 0.0
          %700 = vmatprep.subr.mxu0 0.0
          %701 = vmatpush1.msra.mxu0 0.0
          %702 = vmatprep.subr.mxu0 0.0
          %703 = vmatpush1.msra.mxu0 0.0
          %704 = vmatprep.subr.mxu0 0.0
          %705 = vmatpush1.msra.mxu0 0.0
          %706 = vmatprep.mubr.f32.mxu0 0.0
          %707 = vmatmul.mubr.f32.gmra.mrb[0].mxu0 %v637
          %v708 = vpop.f32.mrb[0].mxu0
          %v709 = vadd.f32 0.0, %v708
          %v710 = vpop.f32.mrb[0].mxu0
          %711 = vmatprep.mubr.f32.mxu0 0.0
          %712 = vmatmul.mubr.f32.gmra.mrb[0].mxu0 %v640
          %v713 = vpop.f32.mrb[0].mxu0
          %v714 = vadd.f32 0.0, %v713
          %v715 = vpop.f32.mrb[0].mxu0
          %716 = vdwg.mxu0
          %v717 = vld [vmem:[%s6] sm:$0xff]
          %v718 = vld [vmem:[%s6 + $0x8] sm:$0xff]
          %v719 = vld [vmem:[%s6 + $0x10] sm:$0xff]
          %v720 = vld [vmem:[%s6 + $0x18] sm:$0xff]
          %vm721 = vcmask 261120
          %v723 = vsel %vm721, %v709, 0
          %v726 = vsel %vm721, %v714, 0
          %728 = vmatprep.subr.mxu0 0.0
          %729 = vmatpush1.msra.mxu0 %v717
          %730 = vmatprep.subr.mxu0 0.0
          %731 = vmatpush1.msra.mxu0 %v718
          %732 = vmatprep.subr.mxu0 0.0
          %733 = vmatpush1.msra.mxu0 %v719
          %734 = vmatprep.subr.mxu0 0.0
          %735 = vmatpush1.msra.mxu0 %v720
          %736 = vmatprep.subr.mxu0 0.0
          %737 = vmatpush1.msra.mxu0 0.0
          %738 = vmatprep.subr.mxu0 0.0
          %739 = vmatpush1.msra.mxu0 0.0
          %740 = vmatprep.subr.mxu0 0.0
          %741 = vmatpush1.msra.mxu0 0.0
          %742 = vmatprep.subr.mxu0 0.0
          %743 = vmatpush1.msra.mxu0 0.0
          %744 = vmatprep.subr.mxu0 0.0
          %745 = vmatpush1.msra.mxu0 0.0
          %746 = vmatprep.subr.mxu0 0.0
          %747 = vmatpush1.msra.mxu0 0.0
          %748 = vmatprep.subr.mxu0 0.0
          %749 = vmatpush1.msra.mxu0 0.0
          %750 = vmatprep.subr.mxu0 0.0
          %751 = vmatpush1.msra.mxu0 0.0
          %752 = vmatprep.subr.mxu0 0.0
          %753 = vmatpush1.msra.mxu0 0.0
          %754 = vmatprep.subr.mxu0 0.0
          %755 = vmatpush1.msra.mxu0 0.0
          %756 = vmatprep.subr.mxu0 0.0
          %757 = vmatpush1.msra.mxu0 0.0
          %758 = vmatprep.subr.mxu0 0.0
          %759 = vmatpush1.msra.mxu0 0.0
          %760 = vmatprep.subr.mxu0 0.0
          %761 = vmatpush1.msra.mxu0 0.0
          %762 = vmatprep.subr.mxu0 0.0
          %763 = vmatpush1.msra.mxu0 0.0
          %764 = vmatprep.subr.mxu0 0.0
          %765 = vmatpush1.msra.mxu0 0.0
          %766 = vmatprep.subr.mxu0 0.0
          %767 = vmatpush1.msra.mxu0 0.0
          %768 = vmatprep.subr.mxu0 0.0
          %769 = vmatpush1.msra.mxu0 0.0
          %770 = vmatprep.subr.mxu0 0.0
          %771 = vmatpush1.msra.mxu0 0.0
          %772 = vmatprep.subr.mxu0 0.0
          %773 = vmatpush1.msra.mxu0 0.0
          %774 = vmatprep.subr.mxu0 0.0
          %775 = vmatpush1.msra.mxu0 0.0
          %776 = vmatprep.subr.mxu0 0.0
          %777 = vmatpush1.msra.mxu0 0.0
          %778 = vmatprep.subr.mxu0 0.0
          %779 = vmatpush1.msra.mxu0 0.0
          %780 = vmatprep.subr.mxu0 0.0
          %781 = vmatpush1.msra.mxu0 0.0
          %782 = vmatprep.subr.mxu0 0.0
          %783 = vmatpush1.msra.mxu0 0.0
          %784 = vmatprep.subr.mxu0 0.0
          %785 = vmatpush1.msra.mxu0 0.0
          %786 = vmatprep.subr.mxu0 0.0
          %787 = vmatpush1.msra.mxu0 0.0
          %788 = vmatprep.subr.mxu0 0.0
          %789 = vmatpush1.msra.mxu0 0.0
          %790 = vmatprep.subr.mxu0 0.0
          %791 = vmatpush1.msra.mxu0 0.0
          %792 = vmatprep.mubr.f32.mxu0 0.0
          %793 = vmatmul.mubr.f32.gmra.mrb[0].mxu0 %v723
          %v794 = vpop.f32.mrb[0].mxu0
          %v795 = vadd.f32 0.0, %v794
          %v796 = vpop.f32.mrb[0].mxu0
          %797 = vmatprep.mubr.f32.mxu0 0.0
          %798 = vmatmul.mubr.f32.gmra.mrb[0].mxu0 %v726
          %v799 = vpop.f32.mrb[0].mxu0
          %v800 = vadd.f32 0.0, %v799
          %v801 = vpop.f32.mrb[0].mxu0
          %802 = vdwg.mxu0
          %803 = vst.msk [vmem:[%s7] sm:$0xff] %vm635, %v795
          %804 = vst.msk [vmem:[%s7 + $0x8] sm:$0xff] %vm635, %v800
        $region94: #{tpu_custom_call.1} parent=81 // pred_fallthru
          _
        // Predicated region
        $region95: #{tpu_custom_call.1} parent=81 // pred_check
          %p805 = pneg %p188
        $region96: #{tpu_custom_call.1} parent=81 // pred_check_branch
          %807 = sbr.rel (%p805) target = $region98
        $region97: #{tpu_custom_call.1} parent=81 // pred_region
          _
        $region98: #{tpu_custom_call.1} parent=81 // pred_fallthru
          _
        // Predicated region
        $region99: #{tpu_custom_call.1} parent=81 // pred_check
          %p808 = pneg %p188
        $region100: #{tpu_custom_call.1} parent=81 // pred_check_branch
          %810 = sbr.rel (%p808) target = $region102
        $region101: #{tpu_custom_call.1} parent=81 // pred_region
          _
        $region102: #{tpu_custom_call.1} parent=81 // pred_fallthru
          _
      $region82: #{tpu_custom_call.1} parent=5 // pred_fallthru
        _
      %p811 = scmp.le.s32.totalorder 2, %s13
      // Predicated region
      $region103: #{tpu_custom_call.1} parent=5 // pred_check
        %p812 = pneg %p811
      $region104: #{tpu_custom_call.1} parent=5 // pred_check_branch
        %814 = sbr.rel (%p812) target = $region106
      $region105: #{tpu_custom_call.1} parent=5 // pred_region
        %s815 = ssub.s32 %s13, 2
      $region106: #{tpu_custom_call.1} parent=5 // pred_fallthru
        _
    $region6: #{tpu_custom_call.1} parent=1 // loop_footer
      %s17 = sadd.s32 1, %s13
    $region7: #{tpu_custom_call.1} parent=1 // loop_footer_branch
      %12 = sbr.rel target = $region3
    $region8: #{tpu_custom_call.1} parent=1 // loop_exit
      _

</llo_original>
